<compile_context>
chip_gen: v5e
topology: v5e:2x2
jax: 0.10.0
libtpu: 0.0.40
codegen_flags: <defaults>
</compile_context>

<pallas_src>
import math
from functools import partial

import jax
import jax.numpy as jnp
from jax.experimental import pallas as pl
from jax.experimental.pallas import tpu as pltpu


def make_pos_embedding(emb_size: int, maxlen: int) -> jnp.ndarray:
    """Deterministic sinusoidal table, shape (maxlen, 1, emb_size), float32."""
    den = jnp.exp(-jnp.arange(0, emb_size, 2, dtype=jnp.float32)
                  * (math.log(10000.0) / emb_size))
    pos = jnp.arange(0, maxlen, dtype=jnp.float32).reshape(maxlen, 1)
    args = pos * den  # (maxlen, emb_size // 2)
    pe = jnp.zeros((maxlen, emb_size), dtype=jnp.float32)
    pe = pe.at[:, 0::2].set(jnp.sin(args))
    pe = pe.at[:, 1::2].set(jnp.cos(args))
    return pe[:, None, :]  # (maxlen, 1, emb_size)


def _add_pos_kernel(x_ref, pos_ref, o_ref, *, batch: int, seq_tile: int):
    """x_ref/o_ref: (seq_tile*batch, E) lane-dense tiles; pos_ref: (seq_tile, E) f32."""
    pos = pos_ref[...]  # float32
    if batch == 1:
        o_ref[...] = (x_ref[...].astype(jnp.float32) + pos).astype(o_ref.dtype)
        return
    # Rows of the (S*B, E) slab are seq-major: row r holds (s = r // B, b = r % B).
    # Batch b's rows form the sublane-strided view {b, b+B, ...}; add the same
    # (seq_tile, E) pos tile to each.  Strided vld/vst; VPU/XLU are idle anyway.
    for b in range(batch):  # static unroll (batch is a trace-time constant)
        sl = pl.ds(b, seq_tile, stride=batch)
        xb = x_ref[sl, :].astype(jnp.float32)
        o_ref[sl, :] = (xb + pos).astype(o_ref.dtype)


def _choose_seq_tile(S: int, B: int, E: int, itemsize: int, *,
                     target_bytes: int = 4 * 1024 * 1024,
                     min_grid: int = 4,
                     min_tile_bytes: int = 512 * 1024) -> int:
    """Number of sequence positions per tile (tile rows of x = ts * B)."""
    sub = max(8, 32 // max(1, itemsize))          # sublane quantum for this dtype
    row_bytes = max(1, B * E * itemsize)          # one sequence position of x
    ts = max(sub, (target_bytes // row_bytes) // sub * sub)
    if ts >= S:
        ts = S                                    # full-extent block (always legal)
    # Keep >= min_grid blocks when the data is big enough so both v7x
    # TensorCores get work; don't shrink below ~min_tile_bytes per tile.
    while (pl.cdiv(S, ts) < min_grid and ts > sub
           and ts * row_bytes > min_tile_bytes):
        ts = max(sub, (ts // 2) // sub * sub)
    return ts


def positional_encoding(token_embedding: jnp.ndarray,
                        pos_embedding: jnp.ndarray,
                        *, seq_tile: int | None = None) -> jnp.ndarray:
    """token_embedding: (S, B, E); pos_embedding: (maxlen, 1, E), maxlen >= S."""
    S, B, E = token_embedding.shape
    dtype = token_embedding.dtype
    itemsize = jnp.dtype(dtype).itemsize
    rows = S * B

    # Free (row-major) reshape of the tokens to a lane-dense 2-D slab.
    x_rows = token_embedding.reshape(rows, E)
    # Positional table at its natural (S, E) size, kept in float32 (tiny in HBM;
    # the batch broadcast happens inside the kernel).
    pos_se = pos_embedding[:S, 0, :].astype(jnp.float32)

    ts = seq_tile if seq_tile is not None else _choose_seq_tile(S, B, E, itemsize)
    ts = min(ts, S)
    tr = ts * B
    grid = (pl.cdiv(S, ts),)

    cost = pl.CostEstimate(
        flops=rows * E,
        transcendentals=0,
        bytes_accessed=2 * rows * E * itemsize + S * E * 4,
    )

    out_rows = pl.pallas_call(
        partial(_add_pos_kernel, batch=B, seq_tile=ts),
        out_shape=jax.ShapeDtypeStruct((rows, E), dtype),
        grid=grid,
        in_specs=[
            pl.BlockSpec((tr, E), lambda i: (i, 0)),   # tokens: (ts*B, E) tile
            pl.BlockSpec((ts, E), lambda i: (i, 0)),   # pos:    (ts, E) tile
        ],
        out_specs=pl.BlockSpec((tr, E), lambda i: (i, 0)),
        input_output_aliases={0: 0},                   # in-place add when donated
        compiler_params=pltpu.CompilerParams(
            dimension_semantics=("parallel",),
            vmem_limit_bytes=32 * 1024 * 1024,
        ),
        cost_estimate=cost,
    )(x_rows, pos_se)

    return out_rows.reshape(S, B, E)


if __name__ == "__main__":
    # Case 1: shapes implied by the PyTorch module defaults (small).
    emb_size = 32
    maxlen = 64
    dropout_p = 0.1  # identity at inference

    seq_len = 8
    batch = 2

    key = jax.random.PRNGKey(0)
    token_embedding = jax.random.normal(key, (seq_len, batch, emb_size),
                                        dtype=jnp.float32)
    pos_embedding = make_pos_embedding(emb_size, maxlen)

    ref = token_embedding + pos_embedding[:seq_len]     # pure-JAX reference (computed first)
    out = jax.block_until_ready(positional_encoding(token_embedding, pos_embedding))
    assert out.shape == (seq_len, batch, emb_size)
    assert jnp.allclose(out, ref, atol=1e-6), "mismatch vs reference (case 1)"

    # Case 2: exercises a multi-block grid, a partial last block and the
    # strided in-kernel batch broadcast.
    S2, B2, E2 = 40, 4, 128
    x2 = jax.random.normal(jax.random.PRNGKey(0), (S2, B2, E2), dtype=jnp.float32)
    pos2 = make_pos_embedding(E2, 64)
    ref2 = x2 + pos2[:S2]
    out2 = jax.block_until_ready(positional_encoding(x2, pos2, seq_tile=16))
    assert out2.shape == (S2, B2, E2)
    assert jnp.allclose(out2, ref2, atol=1e-6), "mismatch vs reference (case 2)"

    print("KERNEL_OK")
</pallas_src>

<mosaic_0001>
module attributes {stable_mosaic.version = 11 : i64} {
  func.func @_add_pos_kernel(%arg0: i32, %arg1: memref<16x32xf32, #tpu.memory_space<vmem>>, %arg2: memref<8x32xf32, #tpu.memory_space<vmem>>, %arg3: memref<16x32xf32, #tpu.memory_space<vmem>>) attributes {dimension_semantics = [#tpu.dimension_semantics<parallel>], iteration_bounds = array<i64: 1>, scalar_prefetch = 0 : i64, scratch_operands = 0 : i64, tpu.core_type = #tpu.core_type<tc>, window_params = [{transform_indices = @transform_0, window_bounds = array<i64: 16, 32>}, {transform_indices = @transform_1, window_bounds = array<i64: 8, 32>}, {transform_indices = @transform_2, window_bounds = array<i64: 16, 32>}]} {
    %c0 = arith.constant 0 : index
    %c0_0 = arith.constant 0 : index
    %0 = vector.load %arg2[%c0, %c0_0] : memref<8x32xf32, #tpu.memory_space<vmem>>, vector<8x32xf32>
    %c0_1 = arith.constant 0 : index
    %c0_2 = arith.constant 0 : index
    %1 = tpu.strided_load %arg1[%c0_1, %c0_2] {strides = array<i32: 2, 1>} : memref<16x32xf32, #tpu.memory_space<vmem>>, vector<8x32xf32>
    %2 = arith.addf %1, %0 : vector<8x32xf32>
    %c0_3 = arith.constant 0 : index
    %c0_4 = arith.constant 0 : index
    %3 = tpu.strided_load %arg3[%c0_3, %c0_4] {strides = array<i32: 2, 1>} : memref<16x32xf32, #tpu.memory_space<vmem>>, vector<8x32xf32>
    tpu.strided_store %arg3[%c0_3, %c0_4], %2 {strides = array<i32: 2, 1>} : memref<16x32xf32, #tpu.memory_space<vmem>>, vector<8x32xf32>
    %c1 = arith.constant 1 : index
    %c0_5 = arith.constant 0 : index
    %4 = tpu.strided_load %arg1[%c1, %c0_5] {strides = array<i32: 2, 1>} : memref<16x32xf32, #tpu.memory_space<vmem>>, vector<8x32xf32>
    %5 = arith.addf %4, %0 : vector<8x32xf32>
    %c1_6 = arith.constant 1 : index
    %c0_7 = arith.constant 0 : index
    %6 = tpu.strided_load %arg3[%c1_6, %c0_7] {strides = array<i32: 2, 1>} : memref<16x32xf32, #tpu.memory_space<vmem>>, vector<8x32xf32>
    tpu.strided_store %arg3[%c1_6, %c0_7], %5 {strides = array<i32: 2, 1>} : memref<16x32xf32, #tpu.memory_space<vmem>>, vector<8x32xf32>
    return
  }
  func.func @transform_0(%arg0: i32) -> (i32, i32) {
    %c0_i32 = arith.constant 0 : i32
    %c0_i32_0 = arith.constant 0 : i32
    return %arg0, %c0_i32 : i32, i32
  }
  func.func @transform_1(%arg0: i32) -> (i32, i32) {
    %c0_i32 = arith.constant 0 : i32
    %c0_i32_0 = arith.constant 0 : i32
    return %arg0, %c0_i32 : i32, i32
  }
  func.func @transform_2(%arg0: i32) -> (i32, i32) {
    %c0_i32 = arith.constant 0 : i32
    %c0_i32_0 = arith.constant 0 : i32
    return %arg0, %c0_i32 : i32, i32
  }
}

</mosaic_0001>

<llo_original>
// kernel: tpu_custom_call.1
$region0: #{tpu_custom_call.1}
  #allocation0 [shape = 'u32[]', space=smem, size = 0x4, offset = 0x4, fixed_abs, tag = 'smem constant byte address 0x4 - core index']
  #allocation1 [shape = 'u32[72,128]{1,0:T(1,128)}', space=vmem, size = 0x9000, scoped, tag = 'internal scratch']
  %s0 = inlined_call_operand.hbm [shape: f32[16,32], index: 0, kind: input, shape index: {}, may-alias: {0,2}]
  %s1 = inlined_call_operand.vmem [shape: f32[8,32], index: 1, kind: input, shape index: {}]
  %s2 = inlined_call_operand.hbm [shape: f32[16,32], index: 2, kind: output, shape index: {}, may-alias: {0,2}]
  %s3 = sld [smem:[#allocation0]]
  $region22: #{tpu_custom_call.1} parent=0
    _
  %s5 = ssub.s32 1, %s3
  %s6 = scalar_select 0, %s5, %s3
  $region1: #{tpu_custom_call.1} parent=0
    #allocation2 [shape = 'u8[8192]{0}', space=vmem, size = 0x2000, scoped, tag = 'input window, operand 0, single buffered']
    #allocation3 [shape = 's32[1]{0}', space=sflag, size = 0x4, scoped, tag = 'scoped memory for tpu_custom_call.1']
    #allocation4 [shape = 's32[1]{0}', space=sflag, size = 0x4, scoped, tag = 'scoped memory for tpu_custom_call.1']
    #allocation5 [shape = 'u8[8192]{0}', space=vmem, size = 0x2000, scoped, tag = 'output window, operand 0, single buffered']
    %7 = vsyncpa [#allocation3], 0
    %8 = vsyncpa [#allocation4], 0
    // Predicated region
    $region2: #{tpu_custom_call.1} parent=1 // pred_check
      _
    $region3: #{tpu_custom_call.1} parent=1 // pred_check_branch
      %10 = sbr.rel (0) target = $region5
    $region4: #{tpu_custom_call.1} parent=1 // pred_region
      %12 = vsyncadd [#allocation3], 0
      %s13 = sshll.u32 %s0, 4
      %s14 = int_to_ptr.hbm [resolvable:$true] %s13
      %s15 = sshll.u32 [#allocation2], 4
      %s16 = int_to_ptr.vmem [resolvable:$true] %s15
      %21 = dma.hbm_to_vmem [thread:$0]  %s14, 256, %s16, [#allocation3], 128, 128, 8
    $region5: #{tpu_custom_call.1} parent=1 // pred_fallthru
      _
    // Predicated region
    $region6: #{tpu_custom_call.1} parent=1 // pred_check
      _
    $region7: #{tpu_custom_call.1} parent=1 // pred_check_branch
      %23 = sbr.rel (0) target = $region9
    $region8: #{tpu_custom_call.1} parent=1 // pred_region
      _
    $region9: #{tpu_custom_call.1} parent=1 // pred_fallthru
      _
    // Predicated region
    $region10: #{tpu_custom_call.1} parent=1 // pred_check
      _
    $region11: #{tpu_custom_call.1} parent=1 // pred_check_branch
      %25 = sbr.rel (0) target = $region13
    $region12: #{tpu_custom_call.1} parent=1 // pred_region
      %27 = dma.done [#allocation3], 256
    $region13: #{tpu_custom_call.1} parent=1 // pred_fallthru
      _
    %v28 = vld [vmem:[%s1] sm:$0xff]
    %v29 = vld [vmem:[#allocation2] ss:$2 sm:$0xff]
    %v30 = vadd.f32 %v29, %v28
    %31 = vst [vmem:[#allocation5] ss:$2 sm:$0xff] %v30
    %s32 = scalar_lea.vmem [#allocation2], 1
    %v33 = vld [vmem:[%s32] ss:$2 sm:$0xff]
    %v34 = vadd.f32 %v33, %v28
    %s35 = scalar_lea.vmem [#allocation5], 1
    %36 = vst [vmem:[%s35] ss:$2 sm:$0xff] %v34
    // Predicated region
    $region14: #{tpu_custom_call.1} parent=1 // pred_check
      _
    $region15: #{tpu_custom_call.1} parent=1 // pred_check_branch
      %38 = sbr.rel (0) target = $region17
    $region16: #{tpu_custom_call.1} parent=1 // pred_region
      %40 = vsyncadd [#allocation4], 0
      %s41 = sshll.u32 [#allocation5], 4
      %s42 = int_to_ptr.vmem [resolvable:$true] %s41
      %s43 = sshll.u32 %s2, 4
      %s44 = int_to_ptr.hbm [resolvable:$true] %s43
      %49 = dma.vmem_to_hbm [thread:$0]  %s42, 256, %s44, [#allocation4], 128, 128, 8
    $region17: #{tpu_custom_call.1} parent=1 // pred_fallthru
      _
    // Predicated region
    $region18: #{tpu_custom_call.1} parent=1 // pred_check
      _
    $region19: #{tpu_custom_call.1} parent=1 // pred_check_branch
      %51 = sbr.rel (0) target = $region21
    $region20: #{tpu_custom_call.1} parent=1 // pred_region
      %53 = dma.done [#allocation4], 256
    $region21: #{tpu_custom_call.1} parent=1 // pred_fallthru
      _
    %54 = vsyncpa [#allocation3], 1
    %55 = vsyncpa [#allocation4], 1

</llo_original>
